<compile_context>
chip_gen: v7x
topology: tpu7x:2x2x1
jax: 0.10.0
libtpu: 0.0.40
codegen_flags: <defaults>
</compile_context>

<pallas_src>
import jax
import jax.numpy as jnp
from jax.experimental import pallas as pl
from jax.experimental.pallas import tpu as pltpu


def _softplus(x):
    # Stable softplus with a single exp + log1p push to the EUP.
    return jnp.maximum(x, 0.0) + jnp.log1p(jnp.exp(-jnp.abs(x)))


def lnn_mlp_kernel(y_ref, w1_ref, b1_ref, w2_ref, b2_ref, w3_ref, b3_ref, out_ref):
    # Transposed (lane-dense) layout:
    #   y_ref : [2, Bt]   (row 0 = q, row 1 = q_t; batch on lanes)
    #   w1_ref: [H, 2]    b1_ref: [H, 1]
    #   w2_ref: [H, H]    b2_ref: [H, 1]
    #   w3_ref: [H, 1]    b3_ref: [1, 1]
    #   out   : [1, Bt]
    q = y_ref[0:1, :]                                   # [1, Bt]
    qt = y_ref[1:2, :]                                  # [1, Bt]

    # Layer 1: K=2 contraction -> two broadcast FMAs on the VPU (no MXU).
    z1 = w1_ref[:, 0:1] * q + w1_ref[:, 1:2] * qt + b1_ref[...]   # [H, Bt]
    h1 = _softplus(z1)

    # Layer 2: HxH contraction -> MXU matmul, f32 accumulate.
    z2 = jnp.dot(w2_ref[...], h1, preferred_element_type=jnp.float32) + b2_ref[...]
    h2 = _softplus(z2)                                  # [H, Bt]

    # Layer 3: N=1 contraction -> elementwise mul + sublane (XLU) reduce.
    lag = jnp.sum(w3_ref[...] * h2, axis=0, keepdims=True) + b3_ref[...]  # [1, Bt]
    out_ref[...] = lag.astype(out_ref.dtype)


def _round_up(x, m):
    return ((x + m - 1) // m) * m


def lnn_forward(y, params, *, batch_tile=256):
    """Pallas implementation of LNN.forward: returns the Lagrangian, shape [B, 1]."""
    w1, b1, w2, b2, w3, b3 = params
    B, D = y.shape
    H = w1.shape[1]

    # ---- layout plumbing (outside the kernel): batch onto the lane axis ----
    y_t = y.T.astype(jnp.float32)                       # [D, B]
    bt = min(_round_up(batch_tile, 128), _round_up(B, 128))
    B_pad = _round_up(B, bt)
    if B_pad != B:
        y_t = jnp.pad(y_t, ((0, 0), (0, B_pad - B)))

    # Weights stored [out, in] so the kernel computes W @ x directly.
    w1t = w1.T                                          # [H, D]
    b1t = b1.reshape(H, 1)
    w2t = w2.T                                          # [H, H]
    b2t = b2.reshape(H, 1)
    w3c = w3.reshape(H, 1)
    b3c = b3.reshape(1, 1)

    grid = (B_pad // bt,)
    const = lambda shape: pl.BlockSpec(shape, lambda i: (0, 0))  # resident block

    out_t = pl.pallas_call(
        lnn_mlp_kernel,
        out_shape=jax.ShapeDtypeStruct((1, B_pad), jnp.float32),
        grid=grid,
        in_specs=[
            pl.BlockSpec((D, bt), lambda i: (0, i)),    # streamed input tile
            const((H, D)), const((H, 1)),               # layer-1 params
            const((H, H)), const((H, 1)),               # layer-2 params
            const((H, 1)), const((1, 1)),               # layer-3 params
        ],
        out_specs=pl.BlockSpec((1, bt), lambda i: (0, i)),
        compiler_params=pltpu.CompilerParams(
            dimension_semantics=("parallel",)),
    )(y_t, w1t, b1t, w2t, b2t, w3c, b3c)

    out = out_t[:, :B].T                                # back to [B, 1]
    # Mirror the PyTorch assert: output must be [batch_size, 1].
    assert out.ndim == 2 and out.shape[1] == 1, \
        'Output tensor should have shape [batch_size, 1]'
    return out


def init_params(key, input_dim=2, hidden_dim=32, output_dim=1):
    """Deterministic synthetic MLP parameters (2 -> H -> H -> 1), PyTorch layout."""
    k1, k2, k3 = jax.random.split(key, 3)
    w1 = jax.random.normal(k1, (input_dim, hidden_dim), jnp.float32) / jnp.sqrt(input_dim)
    b1 = jnp.zeros((1, hidden_dim), jnp.float32)
    w2 = jax.random.normal(k2, (hidden_dim, hidden_dim), jnp.float32) / jnp.sqrt(hidden_dim)
    b2 = jnp.zeros((1, hidden_dim), jnp.float32)
    w3 = jax.random.normal(k3, (hidden_dim, output_dim), jnp.float32) / jnp.sqrt(hidden_dim)
    b3 = jnp.zeros((1, output_dim), jnp.float32)
    return (w1, b1, w2, b2, w3, b3)


if __name__ == "__main__":
    key = jax.random.PRNGKey(0)
    pkey, ykey = jax.random.split(key)

    batch = 1024           # fused into one call: grid of 4 batch tiles of 256
    input_dim = 2          # pendulum state: (q, q_t)
    hidden_dim = 32

    params = init_params(pkey, input_dim=input_dim, hidden_dim=hidden_dim)
    y = jax.random.normal(ykey, (batch, input_dim), jnp.float32)

    lagrangian = lnn_forward(y, params, batch_tile=256)
    jax.block_until_ready(lagrangian)

    # Cross-check against a plain-JAX reference of the same MLP (row-batch layout).
    w1, b1, w2, b2, w3, b3 = params
    ref = jnp.dot(
        jax.nn.softplus(jnp.dot(jax.nn.softplus(jnp.dot(y, w1) + b1), w2) + b2), w3
    ) + b3
    assert lagrangian.shape == (batch, 1)
    assert jnp.allclose(lagrangian, ref, atol=2e-4, rtol=2e-4)

    # Also exercise a non-128-multiple batch (pad/slice path).
    y_small = y[:100]
    lag_small = lnn_forward(y_small, params, batch_tile=256)
    jax.block_until_ready(lag_small)
    assert lag_small.shape == (100, 1)
    assert jnp.allclose(lag_small, ref[:100], atol=2e-4, rtol=2e-4)

    print("KERNEL_OK")
</pallas_src>

<mosaic_0001>
module attributes {stable_mosaic.version = 11 : i64} {
  func.func @lnn_mlp_kernel(%arg0: i32, %arg1: memref<2x256xf32, #tpu.memory_space<vmem>>, %arg2: memref<32x2xf32, #tpu.memory_space<vmem>>, %arg3: memref<32x1xf32, #tpu.memory_space<vmem>>, %arg4: memref<32x32xf32, #tpu.memory_space<vmem>>, %arg5: memref<32x1xf32, #tpu.memory_space<vmem>>, %arg6: memref<32x1xf32, #tpu.memory_space<vmem>>, %arg7: memref<1x1xf32, #tpu.memory_space<vmem>>, %arg8: memref<1x256xf32, #tpu.memory_space<vmem>>) attributes {dimension_semantics = [#tpu.dimension_semantics<parallel>], iteration_bounds = array<i64: 4>, scalar_prefetch = 0 : i64, scratch_operands = 0 : i64, tpu.core_type = #tpu.core_type<tc>, window_params = [{transform_indices = @transform_0, window_bounds = array<i64: 2, 256>}, {pipeline_mode = #tpu.pipeline_mode<synchronous>, transform_indices = @transform_1, window_bounds = array<i64: 32, 2>}, {pipeline_mode = #tpu.pipeline_mode<synchronous>, transform_indices = @transform_2, window_bounds = array<i64: 32, 1>}, {pipeline_mode = #tpu.pipeline_mode<synchronous>, transform_indices = @transform_3, window_bounds = array<i64: 32, 32>}, {pipeline_mode = #tpu.pipeline_mode<synchronous>, transform_indices = @transform_4, window_bounds = array<i64: 32, 1>}, {pipeline_mode = #tpu.pipeline_mode<synchronous>, transform_indices = @transform_5, window_bounds = array<i64: 32, 1>}, {pipeline_mode = #tpu.pipeline_mode<synchronous>, transform_indices = @transform_6, window_bounds = array<i64: 1, 1>}, {transform_indices = @transform_7, window_bounds = array<i64: 1, 256>}]} {
    %c0 = arith.constant 0 : index
    %c0_0 = arith.constant 0 : index
    %0 = vector.load %arg1[%c0, %c0_0] : memref<2x256xf32, #tpu.memory_space<vmem>>, vector<1x256xf32>
    %c1 = arith.constant 1 : index
    %c0_1 = arith.constant 0 : index
    %1 = vector.load %arg1[%c1, %c0_1] : memref<2x256xf32, #tpu.memory_space<vmem>>, vector<1x256xf32>
    %c0_2 = arith.constant 0 : index
    %c0_3 = arith.constant 0 : index
    %2 = vector.load %arg2[%c0_2, %c0_3] : memref<32x2xf32, #tpu.memory_space<vmem>>, vector<32x1xf32>
    %3 = vector.broadcast %2 : vector<32x1xf32> to vector<32x256xf32>
    %4 = vector.broadcast %0 : vector<1x256xf32> to vector<32x256xf32>
    %5 = arith.mulf %3, %4 : vector<32x256xf32>
    %c0_4 = arith.constant 0 : index
    %c1_5 = arith.constant 1 : index
    %6 = vector.load %arg2[%c0_4, %c1_5] : memref<32x2xf32, #tpu.memory_space<vmem>>, vector<32x1xf32>
    %7 = vector.broadcast %6 : vector<32x1xf32> to vector<32x256xf32>
    %8 = vector.broadcast %1 : vector<1x256xf32> to vector<32x256xf32>
    %9 = arith.mulf %7, %8 : vector<32x256xf32>
    %10 = arith.addf %5, %9 : vector<32x256xf32>
    %c0_6 = arith.constant 0 : index
    %c0_7 = arith.constant 0 : index
    %11 = vector.load %arg3[%c0_6, %c0_7] : memref<32x1xf32, #tpu.memory_space<vmem>>, vector<32x1xf32>
    %12 = vector.broadcast %11 : vector<32x1xf32> to vector<32x256xf32>
    %13 = arith.addf %10, %12 : vector<32x256xf32>
    %cst = arith.constant 0.000000e+00 : f32
    %14 = vector.broadcast %cst : f32 to vector<32x256xf32>
    %15 = arith.maximumf %13, %14 : vector<32x256xf32>
    %16 = math.absf %13 : vector<32x256xf32>
    %cst_8 = arith.constant 0.000000e+00 : f32
    %17 = vector.broadcast %cst_8 : f32 to vector<32x256xf32>
    %18 = arith.subf %17, %16 : vector<32x256xf32>
    %19 = math.exp %18 : vector<32x256xf32>
    %20 = math.log1p %19 : vector<32x256xf32>
    %21 = arith.addf %15, %20 : vector<32x256xf32>
    %c0_9 = arith.constant 0 : index
    %c0_10 = arith.constant 0 : index
    %22 = vector.load %arg4[%c0_9, %c0_10] : memref<32x32xf32, #tpu.memory_space<vmem>>, vector<32x32xf32>
    %cst_11 = arith.constant dense<0.000000e+00> : vector<32x256xf32>
    %23 = tpu.matmul %22, %21, %cst_11 {dimension_numbers = #tpu.dot_dimension_numbers<[1], [0], [0], [1], [0, 0, 1, 1], [], []>} : vector<32x32xf32>, vector<32x256xf32>, vector<32x256xf32> -> vector<32x256xf32>
    %c0_12 = arith.constant 0 : index
    %c0_13 = arith.constant 0 : index
    %24 = vector.load %arg5[%c0_12, %c0_13] : memref<32x1xf32, #tpu.memory_space<vmem>>, vector<32x1xf32>
    %25 = vector.broadcast %24 : vector<32x1xf32> to vector<32x256xf32>
    %26 = arith.addf %23, %25 : vector<32x256xf32>
    %cst_14 = arith.constant 0.000000e+00 : f32
    %27 = vector.broadcast %cst_14 : f32 to vector<32x256xf32>
    %28 = arith.maximumf %26, %27 : vector<32x256xf32>
    %29 = math.absf %26 : vector<32x256xf32>
    %cst_15 = arith.constant 0.000000e+00 : f32
    %30 = vector.broadcast %cst_15 : f32 to vector<32x256xf32>
    %31 = arith.subf %30, %29 : vector<32x256xf32>
    %32 = math.exp %31 : vector<32x256xf32>
    %33 = math.log1p %32 : vector<32x256xf32>
    %34 = arith.addf %28, %33 : vector<32x256xf32>
    %c0_16 = arith.constant 0 : index
    %c0_17 = arith.constant 0 : index
    %35 = vector.load %arg6[%c0_16, %c0_17] : memref<32x1xf32, #tpu.memory_space<vmem>>, vector<32x1xf32>
    %36 = vector.broadcast %35 : vector<32x1xf32> to vector<32x256xf32>
    %37 = arith.mulf %36, %34 : vector<32x256xf32>
    %cst_18 = arith.constant dense<0.000000e+00> : vector<256xf32>
    %38 = vector.multi_reduction <add>, %37, %cst_18 [0] : vector<32x256xf32> to vector<256xf32>
    %39 = vector.shape_cast %38 : vector<256xf32> to vector<1x256xf32>
    %c0_19 = arith.constant 0 : index
    %c0_20 = arith.constant 0 : index
    %40 = vector.load %arg7[%c0_19, %c0_20] : memref<1x1xf32, #tpu.memory_space<vmem>>, vector<1x1xf32>
    %41 = vector.broadcast %40 : vector<1x1xf32> to vector<1x256xf32>
    %42 = arith.addf %39, %41 : vector<1x256xf32>
    %c0_21 = arith.constant 0 : index
    %c0_22 = arith.constant 0 : index
    %43 = vector.load %arg8[%c0_21, %c0_22] : memref<1x256xf32, #tpu.memory_space<vmem>>, vector<1x256xf32>
    tpu.vector_store %arg8[%c0_21, %c0_22], %42 {strides = array<i32>} : memref<1x256xf32, #tpu.memory_space<vmem>>, vector<1x256xf32>,
    return
  }
  func.func @transform_0(%arg0: i32) -> (i32, i32) {
    %c0_i32 = arith.constant 0 : i32
    %c0_i32_0 = arith.constant 0 : i32
    return %c0_i32, %arg0 : i32, i32
  }
  func.func @transform_1(%arg0: i32) -> (i32, i32) {
    %c0_i32 = arith.constant 0 : i32
    %c0_i32_0 = arith.constant 0 : i32
    %c0_i32_1 = arith.constant 0 : i32
    return %c0_i32, %c0_i32_0 : i32, i32
  }
  func.func @transform_2(%arg0: i32) -> (i32, i32) {
    %c0_i32 = arith.constant 0 : i32
    %c0_i32_0 = arith.constant 0 : i32
    %c0_i32_1 = arith.constant 0 : i32
    return %c0_i32, %c0_i32_0 : i32, i32
  }
  func.func @transform_3(%arg0: i32) -> (i32, i32) {
    %c0_i32 = arith.constant 0 : i32
    %c0_i32_0 = arith.constant 0 : i32
    %c0_i32_1 = arith.constant 0 : i32
    return %c0_i32, %c0_i32_0 : i32, i32
  }
  func.func @transform_4(%arg0: i32) -> (i32, i32) {
    %c0_i32 = arith.constant 0 : i32
    %c0_i32_0 = arith.constant 0 : i32
    %c0_i32_1 = arith.constant 0 : i32
    return %c0_i32, %c0_i32_0 : i32, i32
  }
  func.func @transform_5(%arg0: i32) -> (i32, i32) {
    %c0_i32 = arith.constant 0 : i32
    %c0_i32_0 = arith.constant 0 : i32
    %c0_i32_1 = arith.constant 0 : i32
    return %c0_i32, %c0_i32_0 : i32, i32
  }
  func.func @transform_6(%arg0: i32) -> (i32, i32) {
    %c0_i32 = arith.constant 0 : i32
    %c0_i32_0 = arith.constant 0 : i32
    %c0_i32_1 = arith.constant 0 : i32
    return %c0_i32, %c0_i32_0 : i32, i32
  }
  func.func @transform_7(%arg0: i32) -> (i32, i32) {
    %c0_i32 = arith.constant 0 : i32
    %c0_i32_0 = arith.constant 0 : i32
    return %c0_i32, %arg0 : i32, i32
  }
}

</mosaic_0001>

<llo_original>
// kernel: tpu_custom_call.1
$region0: #{tpu_custom_call.1}
  #allocation0 [shape = 'u32[]', space=smem, size = 0x4, offset = 0x4, fixed_abs, tag = 'smem constant byte address 0x4 - core index']
  #allocation1 [shape = 'u32[144,128]{1,0:T(1,128)}', space=vmem, size = 0x12000, scoped, tag = 'internal scratch']
  #allocation2 [shape = 'f32[1,1]{1,0:T(1,128)S(1)}', space=vmem, size = 0x200, scoped, tag = 'scoped memory for tpu_custom_call.1']
  %s0 = inlined_call_operand.vmem [shape: f32[2,1024], index: 0, kind: input, shape index: {}]
  %s1 = inlined_call_operand.vmem [shape: f32[32,2], index: 1, kind: input, shape index: {}]
  %s2 = inlined_call_operand.vmem [shape: f32[32,1], index: 2, kind: input, shape index: {}]
  %s3 = inlined_call_operand.vmem [shape: f32[32,32], index: 3, kind: input, shape index: {}]
  %s4 = inlined_call_operand.vmem [shape: f32[32,1], index: 4, kind: input, shape index: {}]
  %s5 = inlined_call_operand.vmem [shape: f32[32,1], index: 5, kind: input, shape index: {}]
  %s6 = inlined_call_operand.<no memory space> [shape: f32[1,1], index: 6, kind: input, shape index: {}]
  %s7 = inlined_call_operand.hbm [shape: f32[1,1024], index: 7, kind: output, shape index: {}]
  %s8 = sld [smem:[#allocation0]]
  $region61: #{tpu_custom_call.1} parent=0
    _
  %s10 = ssub.s32 1, %s8
  %s11 = scalar_select 0, %s10, %s8
  %v12 = vstv %s6
  %13 = vst [vmem:[#allocation2] sm:$0x1] %v12
  $region1: #{tpu_custom_call.1} parent=0
    #allocation3 [shape = 'u8[2048]{0}', space=vmem, size = 0x800, scoped, tag = 'output window, operand 0']
    #allocation4 [shape = 's32[2]{0}', space=sflag, size = 0x8, scoped, tag = 'scoped memory for tpu_custom_call.1']
    %14 = vsyncpa [#allocation4], 0
    %s15 = scalar_lea.sflag [#allocation4], 1
    %16 = vsyncpa %s15, 0
    loop: start=0, step=1, limit=6
    $region2: #{tpu_custom_call.1} parent=1 // loop_pre_header
      _
    $region3: #{tpu_custom_call.1} parent=1 // loop_header
      %s18 = sphi 0, %s22
      %p19 = scmp.ge.s32.totalorder %s18, 6
      %s28 = sphi 0, %s30
      %s31 = sphi 0, %s28
      %s32 = sphi 0, %s31
      %s48 = sphi 0, %s32
      %s52 = sphi 0, %s52
      %s54 = sphi 0, %s52
      %s55 = sphi 0, %s54
      %s69 = sphi 0, %s55
      %s73 = sphi 0, %s73
      %s75 = sphi 0, %s73
      %s76 = sphi 0, %s75
      %s90 = sphi 0, %s76
      %s94 = sphi 0, %s94
      %s96 = sphi 0, %s94
      %s97 = sphi 0, %s96
      %s111 = sphi 0, %s97
      %s115 = sphi 0, %s115
      %s117 = sphi 0, %s115
      %s118 = sphi 0, %s117
      %s132 = sphi 0, %s118
      %s136 = sphi 0, %s136
      %s138 = sphi 0, %s136
      %s139 = sphi 0, %s138
      %s153 = sphi 0, %s139
      %s157 = sphi 0, %s157
      %s159 = sphi 0, %s157
      %s160 = sphi 0, %s159
      %s174 = sphi 0, %s160
      %s180 = sphi 0, %s182
      %s183 = sphi 0, %s180
      %s184 = sphi 0, %s183
      %s200 = sphi 0, %s184
    $region4: #{tpu_custom_call.1} parent=1 // loop_header_branch
      %21 = sbr.rel (%p19) target = $region8
    $region5: #{tpu_custom_call.1} parent=1 // loop_body
      %s23 = ssub.s32 %s18, 1
      %s24 = ssub.s32 %s18, 2
      %s25 = sadd.s32 %s18, 1
      %s26 = ssub.s32 %s18, %s25
      %p27 = scmp.eq.s32.totalorder %s26, 0
      %s29 = sadd.s32 %s28, 1
      %s30 = scalar_select %p27, %s28, %s29
      %p33 = pneg %p27
      %p34 = scmp.eq.s32.totalorder %s18, 3
      %p35 = por %p33, %p34
      %p36 = scmp.ne.s32.totalorder %s28, %s31
      %p37 = scmp.eq.s32.totalorder %s18, 0
      %p38 = por %p36, %p37
      %p39 = scmp.ne.s32.totalorder %s28, %s31
      %p40 = scmp.eq.s32.totalorder %s23, 3
      %p41 = por %p39, %p40
      %p42 = scmp.ne.s32.totalorder %s31, %s32
      %p43 = scmp.eq.s32.totalorder %s23, 0
      %p44 = por %p42, %p43
      %p45 = scmp.ne.s32.totalorder %s31, %s32
      %p46 = scmp.eq.s32.totalorder %s24, 3
      %p47 = por %p45, %p46
      %p49 = scmp.ne.s32.totalorder %s32, %s48
      %p50 = scmp.eq.s32.totalorder %s24, 0
      %p51 = por %p49, %p50
      %s53 = sadd.s32 %s52, 1
      %p56 = scmp.eq.s32.totalorder %s18, 3
      %p57 = scmp.ne.s32.totalorder %s52, %s54
      %p58 = scmp.eq.s32.totalorder %s18, 0
      %p59 = por %p57, %p58
      %p60 = scmp.ne.s32.totalorder %s52, %s54
      %p61 = scmp.eq.s32.totalorder %s23, 3
      %p62 = por %p60, %p61
      %p63 = scmp.ne.s32.totalorder %s54, %s55
      %p64 = scmp.eq.s32.totalorder %s23, 0
      %p65 = por %p63, %p64
      %p66 = scmp.ne.s32.totalorder %s54, %s55
      %p67 = scmp.eq.s32.totalorder %s24, 3
      %p68 = por %p66, %p67
      %p70 = scmp.ne.s32.totalorder %s55, %s69
      %p71 = scmp.eq.s32.totalorder %s24, 0
      %p72 = por %p70, %p71
      %s74 = sadd.s32 %s73, 1
      %p77 = scmp.eq.s32.totalorder %s18, 3
      %p78 = scmp.ne.s32.totalorder %s73, %s75
      %p79 = scmp.eq.s32.totalorder %s18, 0
      %p80 = por %p78, %p79
      %p81 = scmp.ne.s32.totalorder %s73, %s75
      %p82 = scmp.eq.s32.totalorder %s23, 3
      %p83 = por %p81, %p82
      %p84 = scmp.ne.s32.totalorder %s75, %s76
      %p85 = scmp.eq.s32.totalorder %s23, 0
      %p86 = por %p84, %p85
      %p87 = scmp.ne.s32.totalorder %s75, %s76
      %p88 = scmp.eq.s32.totalorder %s24, 3
      %p89 = por %p87, %p88
      %p91 = scmp.ne.s32.totalorder %s76, %s90
      %p92 = scmp.eq.s32.totalorder %s24, 0
      %p93 = por %p91, %p92
      %s95 = sadd.s32 %s94, 1
      %p98 = scmp.eq.s32.totalorder %s18, 3
      %p99 = scmp.ne.s32.totalorder %s94, %s96
      %p100 = scmp.eq.s32.totalorder %s18, 0
      %p101 = por %p99, %p100
      %p102 = scmp.ne.s32.totalorder %s94, %s96
      %p103 = scmp.eq.s32.totalorder %s23, 3
      %p104 = por %p102, %p103
      %p105 = scmp.ne.s32.totalorder %s96, %s97
      %p106 = scmp.eq.s32.totalorder %s23, 0
      %p107 = por %p105, %p106
      %p108 = scmp.ne.s32.totalorder %s96, %s97
      %p109 = scmp.eq.s32.totalorder %s24, 3
      %p110 = por %p108, %p109
      %p112 = scmp.ne.s32.totalorder %s97, %s111
      %p113 = scmp.eq.s32.totalorder %s24, 0
      %p114 = por %p112, %p113
      %s116 = sadd.s32 %s115, 1
      %p119 = scmp.eq.s32.totalorder %s18, 3
      %p120 = scmp.ne.s32.totalorder %s115, %s117
      %p121 = scmp.eq.s32.totalorder %s18, 0
      %p122 = por %p120, %p121
      %p123 = scmp.ne.s32.totalorder %s115, %s117
      %p124 = scmp.eq.s32.totalorder %s23, 3
      %p125 = por %p123, %p124
      %p126 = scmp.ne.s32.totalorder %s117, %s118
      %p127 = scmp.eq.s32.totalorder %s23, 0
      %p128 = por %p126, %p127
      %p129 = scmp.ne.s32.totalorder %s117, %s118
      %p130 = scmp.eq.s32.totalorder %s24, 3
      %p131 = por %p129, %p130
      %p133 = scmp.ne.s32.totalorder %s118, %s132
      %p134 = scmp.eq.s32.totalorder %s24, 0
      %p135 = por %p133, %p134
      %s137 = sadd.s32 %s136, 1
      %p140 = scmp.eq.s32.totalorder %s18, 3
      %p141 = scmp.ne.s32.totalorder %s136, %s138
      %p142 = scmp.eq.s32.totalorder %s18, 0
      %p143 = por %p141, %p142
      %p144 = scmp.ne.s32.totalorder %s136, %s138
      %p145 = scmp.eq.s32.totalorder %s23, 3
      %p146 = por %p144, %p145
      %p147 = scmp.ne.s32.totalorder %s138, %s139
      %p148 = scmp.eq.s32.totalorder %s23, 0
      %p149 = por %p147, %p148
      %p150 = scmp.ne.s32.totalorder %s138, %s139
      %p151 = scmp.eq.s32.totalorder %s24, 3
      %p152 = por %p150, %p151
      %p154 = scmp.ne.s32.totalorder %s139, %s153
      %p155 = scmp.eq.s32.totalorder %s24, 0
      %p156 = por %p154, %p155
      %s158 = sadd.s32 %s157, 1
      %p161 = scmp.eq.s32.totalorder %s18, 3
      %p162 = scmp.ne.s32.totalorder %s157, %s159
      %p163 = scmp.eq.s32.totalorder %s18, 0
      %p164 = por %p162, %p163
      %p165 = scmp.ne.s32.totalorder %s157, %s159
      %p166 = scmp.eq.s32.totalorder %s23, 3
      %p167 = por %p165, %p166
      %p168 = scmp.ne.s32.totalorder %s159, %s160
      %p169 = scmp.eq.s32.totalorder %s23, 0
      %p170 = por %p168, %p169
      %p171 = scmp.ne.s32.totalorder %s159, %s160
      %p172 = scmp.eq.s32.totalorder %s24, 3
      %p173 = por %p171, %p172
      %p175 = scmp.ne.s32.totalorder %s160, %s174
      %p176 = scmp.eq.s32.totalorder %s24, 0
      %p177 = por %p175, %p176
      %s178 = ssub.s32 %s18, %s25
      %p179 = scmp.eq.s32.totalorder %s178, 0
      %s181 = sadd.s32 %s180, 1
      %s182 = scalar_select %p179, %s180, %s181
      %p185 = pneg %p179
      %p186 = scmp.eq.s32.totalorder %s18, 3
      %p187 = por %p185, %p186
      %p188 = scmp.ne.s32.totalorder %s180, %s183
      %p189 = scmp.eq.s32.totalorder %s18, 0
      %p190 = por %p188, %p189
      %p191 = scmp.ne.s32.totalorder %s180, %s183
      %p192 = scmp.eq.s32.totalorder %s23, 3
      %p193 = por %p191, %p192
      %p194 = scmp.ne.s32.totalorder %s183, %s184
      %p195 = scmp.eq.s32.totalorder %s23, 0
      %p196 = por %p194, %p195
      %p197 = scmp.ne.s32.totalorder %s183, %s184
      %p198 = scmp.eq.s32.totalorder %s24, 3
      %p199 = por %p197, %p198
      %p201 = scmp.ne.s32.totalorder %s184, %s200
      %p202 = scmp.eq.s32.totalorder %s24, 0
      %p203 = por %p201, %p202
      %p204 = scmp.le.s32.totalorder 1, %s18
      %p205 = scmp.lt.s32.totalorder %s18, 5
      %p206 = pnand %p204, %p205
      %p207 = pneg %p206
      // Predicated region
      $region9: #{tpu_custom_call.1} parent=5 // pred_check
        _
      $region10: #{tpu_custom_call.1} parent=5 // pred_check_branch
        %209 = sbr.rel (%p206) target = $region12
      $region11: #{tpu_custom_call.1} parent=5 // pred_region
        %s210 = ssub.s32 %s18, 1
        // Predicated region
        $region13: #{tpu_custom_call.1} parent=11 // pred_check
          %p211 = pneg %p65
        $region14: #{tpu_custom_call.1} parent=11 // pred_check_branch
          %213 = sbr.rel (%p211) target = $region16
        $region15: #{tpu_custom_call.1} parent=11 // pred_region
          _
        $region16: #{tpu_custom_call.1} parent=11 // pred_fallthru
          _
        // Predicated region
        $region17: #{tpu_custom_call.1} parent=11 // pred_check
          %p214 = pneg %p86
        $region18: #{tpu_custom_call.1} parent=11 // pred_check_branch
          %216 = sbr.rel (%p214) target = $region20
        $region19: #{tpu_custom_call.1} parent=11 // pred_region
          _
        $region20: #{tpu_custom_call.1} parent=11 // pred_fallthru
          _
        // Predicated region
        $region21: #{tpu_custom_call.1} parent=11 // pred_check
          %p217 = pneg %p107
        $region22: #{tpu_custom_call.1} parent=11 // pred_check_branch
          %219 = sbr.rel (%p217) target = $region24
        $region23: #{tpu_custom_call.1} parent=11 // pred_region
          _
        $region24: #{tpu_custom_call.1} parent=11 // pred_fallthru
          _
        // Predicated region
        $region25: #{tpu_custom_call.1} parent=11 // pred_check
          %p220 = pneg %p128
        $region26: #{tpu_custom_call.1} parent=11 // pred_check_branch
          %222 = sbr.rel (%p220) target = $region28
        $region27: #{tpu_custom_call.1} parent=11 // pred_region
          _
        $region28: #{tpu_custom_call.1} parent=11 // pred_fallthru
          _
        // Predicated region
        $region29: #{tpu_custom_call.1} parent=11 // pred_check
          %p223 = pneg %p149
        $region30: #{tpu_custom_call.1} parent=11 // pred_check_branch
          %225 = sbr.rel (%p223) target = $region32
        $region31: #{tpu_custom_call.1} parent=11 // pred_region
          _
        $region32: #{tpu_custom_call.1} parent=11 // pred_fallthru
          _
        // Predicated region
        $region33: #{tpu_custom_call.1} parent=11 // pred_check
          %p226 = pneg %p170
        $region34: #{tpu_custom_call.1} parent=11 // pred_check_branch
          %228 = sbr.rel (%p226) target = $region36
        $region35: #{tpu_custom_call.1} parent=11 // pred_region
          _
        $region36: #{tpu_custom_call.1} parent=11 // pred_fallthru
          _
      $region12: #{tpu_custom_call.1} parent=5 // pred_fallthru
        _
      %p229 = scmp.lt.s32.totalorder %s18, 4
      // Predicated region
      $region37: #{tpu_custom_call.1} parent=5 // pred_check
        %p230 = pneg %p229
      $region38: #{tpu_custom_call.1} parent=5 // pred_check_branch
        %232 = sbr.rel (%p230) target = $region40
      $region39: #{tpu_custom_call.1} parent=5 // pred_region
        // Predicated region
        $region41: #{tpu_custom_call.1} parent=39 // pred_check
          %p233 = pneg %p38
        $region42: #{tpu_custom_call.1} parent=39 // pred_check_branch
          %235 = sbr.rel (%p233) target = $region44
        $region43: #{tpu_custom_call.1} parent=39 // pred_region
          %s236 = smul.u32 2, %s18
          %p237 = scmp.lt.s32.totalorder %s236, 7
          %s238 = scalar_select %p237, %s236, 7
          %s239 = smul.addr %s238, 2
          %s240 = scalar_lea.vmem %s0, %s239
          %s241 = smul.u32 2, %s18
        $region44: #{tpu_custom_call.1} parent=39 // pred_fallthru
          _
      $region40: #{tpu_custom_call.1} parent=5 // pred_fallthru
        _
      %p242 = scmp.le.s32.totalorder 1, %s18
      %p243 = scmp.lt.s32.totalorder %s18, 5
      %p244 = pnand %p242, %p243
      %p245 = pneg %p244
      // Predicated region
      $region45: #{tpu_custom_call.1} parent=5 // pred_check
        _
      $region46: #{tpu_custom_call.1} parent=5 // pred_check_branch
        %247 = sbr.rel (%p244) target = $region48
      $region47: #{tpu_custom_call.1} parent=5 // pred_region
        %s248 = ssub.s32 %s18, 1
        %s249 = smul.u32 2, %s23
        %p250 = scmp.lt.s32.totalorder %s249, 7
        %s251 = scalar_select %p250, %s249, 7
        %s252 = smul.addr %s251, 2
        %s253 = scalar_lea.vmem %s0, %s252
        %p254 = pneg %p44
        %p255 = pneg %p41
        %p256 = pneg %p65
        %p257 = pneg %p62
        %p258 = pneg %p86
        %p259 = pneg %p83
        %p260 = pneg %p107
        %p261 = pneg %p104
        %p262 = pneg %p128
        %p263 = pneg %p125
        %p264 = pneg %p149
        %p265 = pneg %p146
        %p266 = pneg %p170
        %p267 = pneg %p167
        %p268 = pneg %p196
        %p269 = pneg %p193
        %s270 = sand.u32 %s183, 1
        %s271 = scalar_lea.sflag [#allocation4], %s270
        %s272 = sand.u32 %s183, 1
        %s273 = smul.addr %s272, 2
        %s274 = scalar_lea.vmem [#allocation3], %s273
        %s275 = smul.u32 2, %s23
        %p276 = scmp.lt.s32.totalorder %s275, 7
        %s277 = scalar_select %p276, %s275, 7
        %s278 = smul.addr %s277, 2
        %s279 = scalar_lea.vmem %s0, %s278
        %s280 = smul.u32 2, %s23
        %s281 = smul.u32 2, %s23
        %v282 = vld [vmem:[%s279] ss:$2 sm:$0x3]
        %s283 = scalar_lea.vmem %s279, 1
        %v284 = vld [vmem:[%s283] ss:$2 sm:$0x3]
        %v285 = vld [vmem:[%s1] sm:$0xff]
        %v286 = vld [vmem:[%s1 + $0x8] sm:$0xff]
        %v287 = vld [vmem:[%s1 + $0x10] sm:$0xff]
        %v288 = vld [vmem:[%s1 + $0x18] sm:$0xff]
        %290 = vset.pattern.permute.xlu0 0
        %291 = vperm.xlu0 %290, %v285
        %v292 = vpop.permute.xlu0 %291
        %295 = vset.pattern.permute.xlu0 0
        %296 = vperm.xlu0 %295, %v286
        %v297 = vpop.permute.xlu0 %296
        %300 = vset.pattern.permute.xlu0 0
        %301 = vperm.xlu0 %300, %v287
        %v302 = vpop.permute.xlu0 %301
        %305 = vset.pattern.permute.xlu0 0
        %306 = vperm.xlu0 %305, %v288
        %v307 = vpop.permute.xlu0 %306
        %v310 = vlaneseq
        %v311 = vshrl.u32 %v310, 7
        %v312 = vsub.s32 0, %v311
        %v313 = vrot.slane %v282, %v312
        %v314 = vlaneseq
        %v315 = vshrl.u32 %v314, 7
        %v316 = vsub.s32 1, %v315
        %v317 = vrot.slane %v282, %v316
        %v320 = vmul.f32 %v292, %v313
        %v321 = vmul.f32 %v292, %v317
        %v322 = vmul.f32 %v297, %v313
        %v323 = vmul.f32 %v297, %v317
        %v324 = vmul.f32 %v302, %v313
        %v325 = vmul.f32 %v302, %v317
        %v326 = vmul.f32 %v307, %v313
        %v327 = vmul.f32 %v307, %v317
        %328 = vset.pattern.permute.xlu0 1
        %329 = vperm.xlu0 %328, %v285
        %v330 = vpop.permute.xlu0 %329
        %332 = vset.pattern.permute.xlu0 1
        %333 = vperm.xlu0 %332, %v286
        %v334 = vpop.permute.xlu0 %333
        %336 = vset.pattern.permute.xlu0 1
        %337 = vperm.xlu0 %336, %v287
        %v338 = vpop.permute.xlu0 %337
        %340 = vset.pattern.permute.xlu0 1
        %341 = vperm.xlu0 %340, %v288
        %v342 = vpop.permute.xlu0 %341
        %v345 = vlaneseq
        %v346 = vshrl.u32 %v345, 7
        %v347 = vsub.s32 0, %v346
        %v348 = vrot.slane %v284, %v347
        %v349 = vlaneseq
        %v350 = vshrl.u32 %v349, 7
        %v351 = vsub.s32 1, %v350
        %v352 = vrot.slane %v284, %v351
        %v355 = vmul.f32 %v330, %v348
        %v356 = vmul.f32 %v330, %v352
        %v357 = vmul.f32 %v334, %v348
        %v358 = vmul.f32 %v334, %v352
        %v359 = vmul.f32 %v338, %v348
        %v360 = vmul.f32 %v338, %v352
        %v361 = vmul.f32 %v342, %v348
        %v362 = vmul.f32 %v342, %v352
        %v363 = vadd.f32 %v320, %v355
        %v364 = vadd.f32 %v321, %v356
        %v365 = vadd.f32 %v322, %v357
        %v366 = vadd.f32 %v323, %v358
        %v367 = vadd.f32 %v324, %v359
        %v368 = vadd.f32 %v325, %v360
        %v369 = vadd.f32 %v326, %v361
        %v370 = vadd.f32 %v327, %v362
        %v371 = vld [vmem:[%s2] sm:$0xff]
        %v372 = vld [vmem:[%s2 + $0x8] sm:$0xff]
        %v373 = vld [vmem:[%s2 + $0x10] sm:$0xff]
        %v374 = vld [vmem:[%s2 + $0x18] sm:$0xff]
        %376 = vset.pattern.permute.xlu0 0
        %377 = vperm.xlu0 %376, %v371
        %v378 = vpop.permute.xlu0 %377
        %381 = vset.pattern.permute.xlu0 0
        %382 = vperm.xlu0 %381, %v372
        %v383 = vpop.permute.xlu0 %382
        %386 = vset.pattern.permute.xlu0 0
        %387 = vperm.xlu0 %386, %v373
        %v388 = vpop.permute.xlu0 %387
        %391 = vset.pattern.permute.xlu0 0
        %392 = vperm.xlu0 %391, %v374
        %v393 = vpop.permute.xlu0 %392
        %v395 = vadd.f32 %v363, %v378
        %v396 = vadd.f32 %v364, %v378
        %v397 = vadd.f32 %v365, %v383
        %v398 = vadd.f32 %v366, %v383
        %v399 = vadd.f32 %v367, %v388
        %v400 = vadd.f32 %v368, %v388
        %v401 = vadd.f32 %v369, %v393
        %v402 = vadd.f32 %v370, %v393
        %v403 = vmax.f32 %v395, 0.0
        %v404 = vmax.f32 %v396, 0.0
        %v405 = vmax.f32 %v397, 0.0
        %v406 = vmax.f32 %v398, 0.0
        %v407 = vmax.f32 %v399, 0.0
        %v408 = vmax.f32 %v400, 0.0
        %v409 = vmax.f32 %v401, 0.0
        %v410 = vmax.f32 %v402, 0.0
        %v411 = vand.u32 2147483647, %v395
        %v412 = vand.u32 2147483647, %v396
        %v413 = vand.u32 2147483647, %v397
        %v414 = vand.u32 2147483647, %v398
        %v415 = vand.u32 2147483647, %v399
        %v416 = vand.u32 2147483647, %v400
        %v417 = vand.u32 2147483647, %v401
        %v418 = vand.u32 2147483647, %v402
        %v419 = vsub.f32 0.0, %v411
        %v420 = vsub.f32 0.0, %v412
        %v421 = vsub.f32 0.0, %v413
        %v422 = vsub.f32 0.0, %v414
        %v423 = vsub.f32 0.0, %v415
        %v424 = vsub.f32 0.0, %v416
        %v425 = vsub.f32 0.0, %v417
        %v426 = vsub.f32 0.0, %v418
        %v427 = vmul.f32 %v419, 1.442695
        %v428 = vpow.pop %v427
        %v429 = vmul.f32 %v420, 1.442695
        %v430 = vpow.pop %v429
        %v431 = vmul.f32 %v421, 1.442695
        %v432 = vpow.pop %v431
        %v433 = vmul.f32 %v422, 1.442695
        %v434 = vpow.pop %v433
        %v435 = vmul.f32 %v423, 1.442695
        %v436 = vpow.pop %v435
        %v437 = vmul.f32 %v424, 1.442695
        %v438 = vpow.pop %v437
        %v439 = vmul.f32 %v425, 1.442695
        %v440 = vpow.pop %v439
        %v441 = vmul.f32 %v426, 1.442695
        %v442 = vpow.pop %v441
        %v443 = vadd.f32 %v428, 1.0
        %v444 = vlog2.pop %v443
        %v445 = vmul.f32 %v444, 0.6931472
        %v446 = vmul.f32 -0.5, %v428
        %v447 = vadd.f32 %v446, 1.0
        %v448 = vmul.f32 %v447, %v428
        %v449 = vand.u32 2147483647, %v428
        %vm450 = vcmp.lt.f32.partialorder %v449, 0.0004427343
        %v451 = vsel %vm450, %v448, %v445
        %v452 = vadd.f32 %v430, 1.0
        %v453 = vlog2.pop %v452
        %v454 = vmul.f32 %v453, 0.6931472
        %v455 = vmul.f32 -0.5, %v430
        %v456 = vadd.f32 %v455, 1.0
        %v457 = vmul.f32 %v456, %v430
        %v458 = vand.u32 2147483647, %v430
        %vm459 = vcmp.lt.f32.partialorder %v458, 0.0004427343
        %v460 = vsel %vm459, %v457, %v454
        %v461 = vadd.f32 %v432, 1.0
        %v462 = vlog2.pop %v461
        %v463 = vmul.f32 %v462, 0.6931472
        %v464 = vmul.f32 -0.5, %v432
        %v465 = vadd.f32 %v464, 1.0
        %v466 = vmul.f32 %v465, %v432
        %v467 = vand.u32 2147483647, %v432
        %vm468 = vcmp.lt.f32.partialorder %v467, 0.0004427343
        %v469 = vsel %vm468, %v466, %v463
        %v470 = vadd.f32 %v434, 1.0
        %v471 = vlog2.pop %v470
        %v472 = vmul.f32 %v471, 0.6931472
        %v473 = vmul.f32 -0.5, %v434
        %v474 = vadd.f32 %v473, 1.0
        %v475 = vmul.f32 %v474, %v434
        %v476 = vand.u32 2147483647, %v434
        %vm477 = vcmp.lt.f32.partialorder %v476, 0.0004427343
        %v478 = vsel %vm477, %v475, %v472
        %v479 = vadd.f32 %v436, 1.0
        %v480 = vlog2.pop %v479
        %v481 = vmul.f32 %v480, 0.6931472
        %v482 = vmul.f32 -0.5, %v436
        %v483 = vadd.f32 %v482, 1.0
        %v484 = vmul.f32 %v483, %v436
        %v485 = vand.u32 2147483647, %v436
        %vm486 = vcmp.lt.f32.partialorder %v485, 0.0004427343
        %v487 = vsel %vm486, %v484, %v481
        %v488 = vadd.f32 %v438, 1.0
        %v489 = vlog2.pop %v488
        %v490 = vmul.f32 %v489, 0.6931472
        %v491 = vmul.f32 -0.5, %v438
        %v492 = vadd.f32 %v491, 1.0
        %v493 = vmul.f32 %v492, %v438
        %v494 = vand.u32 2147483647, %v438
        %vm495 = vcmp.lt.f32.partialorder %v494, 0.0004427343
        %v496 = vsel %vm495, %v493, %v490
        %v497 = vadd.f32 %v440, 1.0
        %v498 = vlog2.pop %v497
        %v499 = vmul.f32 %v498, 0.6931472
        %v500 = vmul.f32 -0.5, %v440
        %v501 = vadd.f32 %v500, 1.0
        %v502 = vmul.f32 %v501, %v440
        %v503 = vand.u32 2147483647, %v440
        %vm504 = vcmp.lt.f32.partialorder %v503, 0.0004427343
        %v505 = vsel %vm504, %v502, %v499
        %v506 = vadd.f32 %v442, 1.0
        %v507 = vlog2.pop %v506
        %v508 = vmul.f32 %v507, 0.6931472
        %v509 = vmul.f32 -0.5, %v442
        %v510 = vadd.f32 %v509, 1.0
        %v511 = vmul.f32 %v510, %v442
        %v512 = vand.u32 2147483647, %v442
        %vm513 = vcmp.lt.f32.partialorder %v512, 0.0004427343
        %v514 = vsel %vm513, %v511, %v508
        %v515 = vadd.f32 %v403, %v451
        %v516 = vadd.f32 %v404, %v460
        %v517 = vadd.f32 %v405, %v469
        %v518 = vadd.f32 %v406, %v478
        %v519 = vadd.f32 %v407, %v487
        %v520 = vadd.f32 %v408, %v496
        %v521 = vadd.f32 %v409, %v505
        %v522 = vadd.f32 %v410, %v514
        %v523 = vld [vmem:[%s3] sm:$0xff]
        %v524 = vld [vmem:[%s3 + $0x8] sm:$0xff]
        %v525 = vld [vmem:[%s3 + $0x10] sm:$0xff]
        %v526 = vld [vmem:[%s3 + $0x18] sm:$0xff]
        %v527 = vld [vmem:[%s4] sm:$0xff]
        %v528 = vld [vmem:[%s4 + $0x8] sm:$0xff]
        %v529 = vld [vmem:[%s4 + $0x10] sm:$0xff]
        %v530 = vld [vmem:[%s4 + $0x18] sm:$0xff]
        %532 = vset.pattern.permute.xlu0 0
        %533 = vperm.xlu0 %532, %v527
        %v534 = vpop.permute.xlu0 %533
        %537 = vset.pattern.permute.xlu0 0
        %538 = vperm.xlu0 %537, %v528
        %v539 = vpop.permute.xlu0 %538
        %542 = vset.pattern.permute.xlu0 0
        %543 = vperm.xlu0 %542, %v529
        %v544 = vpop.permute.xlu0 %543
        %547 = vset.pattern.permute.xlu0 0
        %548 = vperm.xlu0 %547, %v530
        %v549 = vpop.permute.xlu0 %548
        %vm551 = vcmask 261120
        %v553 = vsel %vm551, %v523, 0
        %v556 = vsel %vm551, %v524, 0
        %v559 = vsel %vm551, %v525, 0
        %v562 = vsel %vm551, %v526, 0
        %564 = vmatprep.subr.mxu0 %v516
        %565 = vmatpush1.msra.mxu0 %v515
        %566 = vmatprep.subr.mxu0 %v518
        %567 = vmatpush1.msra.mxu0 %v517
        %568 = vmatprep.subr.mxu0 %v520
        %569 = vmatpush1.msra.mxu0 %v519
        %570 = vmatprep.subr.mxu0 %v522
        %571 = vmatpush1.msra.mxu0 %v521
        %572 = vmatprep.subr.mxu0 0.0
        %573 = vmatpush1.msra.mxu0 0.0
        %574 = vmatprep.subr.mxu0 0.0
        %575 = vmatpush1.msra.mxu0 0.0
        %576 = vmatprep.subr.mxu0 0.0
        %577 = vmatpush1.msra.mxu0 0.0
        %578 = vmatprep.subr.mxu0 0.0
        %579 = vmatpush1.msra.mxu0 0.0
        %580 = vmatprep.subr.mxu0 0.0
        %581 = vmatpush1.msra.mxu0 0.0
        %582 = vmatprep.subr.mxu0 0.0
        %583 = vmatpush1.msra.mxu0 0.0
        %584 = vmatprep.subr.mxu0 0.0
        %585 = vmatpush1.msra.mxu0 0.0
        %586 = vmatprep.subr.mxu0 0.0
        %587 = vmatpush1.msra.mxu0 0.0
        %588 = vmatprep.subr.mxu0 0.0
        %589 = vmatpush1.msra.mxu0 0.0
        %590 = vmatprep.subr.mxu0 0.0
        %591 = vmatpush1.msra.mxu0 0.0
        %592 = vmatprep.subr.mxu0 0.0
        %593 = vmatpush1.msra.mxu0 0.0
        %594 = vmatprep.subr.mxu0 0.0
        %595 = vmatpush1.msra.mxu0 0.0
        %596 = vmatprep.subr.mxu0 0.0
        %597 = vmatpush1.msra.mxu0 0.0
        %598 = vmatprep.subr.mxu0 0.0
        %599 = vmatpush1.msra.mxu0 0.0
        %600 = vmatprep.subr.mxu0 0.0
        %601 = vmatpush1.msra.mxu0 0.0
        %602 = vmatprep.subr.mxu0 0.0
        %603 = vmatpush1.msra.mxu0 0.0
        %604 = vmatprep.subr.mxu0 0.0
        %605 = vmatpush1.msra.mxu0 0.0
        %606 = vmatprep.subr.mxu0 0.0
        %607 = vmatpush1.msra.mxu0 0.0
        %608 = vmatprep.subr.mxu0 0.0
        %609 = vmatpush1.msra.mxu0 0.0
        %610 = vmatprep.subr.mxu0 0.0
        %611 = vmatpush1.msra.mxu0 0.0
        %612 = vmatprep.subr.mxu0 0.0
        %613 = vmatpush1.msra.mxu0 0.0
        %614 = vmatprep.subr.mxu0 0.0
        %615 = vmatpush1.msra.mxu0 0.0
        %616 = vmatprep.subr.mxu0 0.0
        %617 = vmatpush1.msra.mxu0 0.0
        %618 = vmatprep.subr.mxu0 0.0
        %619 = vmatpush1.msra.mxu0 0.0
        %620 = vmatprep.subr.mxu0 0.0
        %621 = vmatpush1.msra.mxu0 0.0
        %622 = vmatprep.subr.mxu0 0.0
        %623 = vmatpush1.msra.mxu0 0.0
        %624 = vmatprep.subr.mxu0 0.0
        %625 = vmatpush1.msra.mxu0 0.0
        %626 = vmatprep.subr.mxu0 0.0
        %627 = vmatpush1.msra.mxu0 0.0
        %628 = vmatprep.mubr.f32.mxu0 0.0
        %629 = vmatmul.mubr.f32.gmra.mrb[0].mxu0 %v553
        %v630 = vpop.f32.mrb[0].mxu0
        %v631 = vadd.f32 %v534, %v630
        %v632 = vpop.f32.mrb[0].mxu0
        %v633 = vadd.f32 %v534, %v632
        %634 = vmatprep.mubr.f32.mxu0 0.0
        %635 = vmatmul.mubr.f32.gmra.mrb[0].mxu0 %v556
        %v636 = vpop.f32.mrb[0].mxu0
        %v637 = vadd.f32 %v539, %v636
        %v638 = vpop.f32.mrb[0].mxu0
        %v639 = vadd.f32 %v539, %v638
        %640 = vmatprep.mubr.f32.mxu0 0.0
        %641 = vmatmul.mubr.f32.gmra.mrb[0].mxu0 %v559
        %v642 = vpop.f32.mrb[0].mxu0
        %v643 = vadd.f32 %v544, %v642
        %v644 = vpop.f32.mrb[0].mxu0
        %v645 = vadd.f32 %v544, %v644
        %646 = vmatprep.mubr.f32.mxu0 0.0
        %647 = vmatmul.mubr.f32.gmra.mrb[0].mxu0 %v562
        %v648 = vpop.f32.mrb[0].mxu0
        %v649 = vadd.f32 %v549, %v648
        %v650 = vpop.f32.mrb[0].mxu0
        %v651 = vadd.f32 %v549, %v650
        %652 = vdwg.mxu0
        %v653 = vmax.f32 %v631, 0.0
        %v654 = vmax.f32 %v633, 0.0
        %v655 = vmax.f32 %v637, 0.0
        %v656 = vmax.f32 %v639, 0.0
        %v657 = vmax.f32 %v643, 0.0
        %v658 = vmax.f32 %v645, 0.0
        %v659 = vmax.f32 %v649, 0.0
        %v660 = vmax.f32 %v651, 0.0
        %v661 = vand.u32 2147483647, %v631
        %v662 = vand.u32 2147483647, %v633
        %v663 = vand.u32 2147483647, %v637
        %v664 = vand.u32 2147483647, %v639
        %v665 = vand.u32 2147483647, %v643
        %v666 = vand.u32 2147483647, %v645
        %v667 = vand.u32 2147483647, %v649
        %v668 = vand.u32 2147483647, %v651
        %v669 = vsub.f32 0.0, %v661
        %v670 = vsub.f32 0.0, %v662
        %v671 = vsub.f32 0.0, %v663
        %v672 = vsub.f32 0.0, %v664
        %v673 = vsub.f32 0.0, %v665
        %v674 = vsub.f32 0.0, %v666
        %v675 = vsub.f32 0.0, %v667
        %v676 = vsub.f32 0.0, %v668
        %v677 = vmul.f32 %v669, 1.442695
        %v678 = vpow.pop %v677
        %v679 = vmul.f32 %v670, 1.442695
        %v680 = vpow.pop %v679
        %v681 = vmul.f32 %v671, 1.442695
        %v682 = vpow.pop %v681
        %v683 = vmul.f32 %v672, 1.442695
        %v684 = vpow.pop %v683
        %v685 = vmul.f32 %v673, 1.442695
        %v686 = vpow.pop %v685
        %v687 = vmul.f32 %v674, 1.442695
        %v688 = vpow.pop %v687
        %v689 = vmul.f32 %v675, 1.442695
        %v690 = vpow.pop %v689
        %v691 = vmul.f32 %v676, 1.442695
        %v692 = vpow.pop %v691
        %v693 = vadd.f32 %v678, 1.0
        %v694 = vlog2.pop %v693
        %v695 = vmul.f32 %v694, 0.6931472
        %v696 = vmul.f32 -0.5, %v678
        %v697 = vadd.f32 %v696, 1.0
        %v698 = vmul.f32 %v697, %v678
        %v699 = vand.u32 2147483647, %v678
        %vm700 = vcmp.lt.f32.partialorder %v699, 0.0004427343
        %v701 = vsel %vm700, %v698, %v695
        %v702 = vadd.f32 %v680, 1.0
        %v703 = vlog2.pop %v702
        %v704 = vmul.f32 %v703, 0.6931472
        %v705 = vmul.f32 -0.5, %v680
        %v706 = vadd.f32 %v705, 1.0
        %v707 = vmul.f32 %v706, %v680
        %v708 = vand.u32 2147483647, %v680
        %vm709 = vcmp.lt.f32.partialorder %v708, 0.0004427343
        %v710 = vsel %vm709, %v707, %v704
        %v711 = vadd.f32 %v682, 1.0
        %v712 = vlog2.pop %v711
        %v713 = vmul.f32 %v712, 0.6931472
        %v714 = vmul.f32 -0.5, %v682
        %v715 = vadd.f32 %v714, 1.0
        %v716 = vmul.f32 %v715, %v682
        %v717 = vand.u32 2147483647, %v682
        %vm718 = vcmp.lt.f32.partialorder %v717, 0.0004427343
        %v719 = vsel %vm718, %v716, %v713
        %v720 = vadd.f32 %v684, 1.0
        %v721 = vlog2.pop %v720
        %v722 = vmul.f32 %v721, 0.6931472
        %v723 = vmul.f32 -0.5, %v684
        %v724 = vadd.f32 %v723, 1.0
        %v725 = vmul.f32 %v724, %v684
        %v726 = vand.u32 2147483647, %v684
        %vm727 = vcmp.lt.f32.partialorder %v726, 0.0004427343
        %v728 = vsel %vm727, %v725, %v722
        %v729 = vadd.f32 %v686, 1.0
        %v730 = vlog2.pop %v729
        %v731 = vmul.f32 %v730, 0.6931472
        %v732 = vmul.f32 -0.5, %v686
        %v733 = vadd.f32 %v732, 1.0
        %v734 = vmul.f32 %v733, %v686
        %v735 = vand.u32 2147483647, %v686
        %vm736 = vcmp.lt.f32.partialorder %v735, 0.0004427343
        %v737 = vsel %vm736, %v734, %v731
        %v738 = vadd.f32 %v688, 1.0
        %v739 = vlog2.pop %v738
        %v740 = vmul.f32 %v739, 0.6931472
        %v741 = vmul.f32 -0.5, %v688
        %v742 = vadd.f32 %v741, 1.0
        %v743 = vmul.f32 %v742, %v688
        %v744 = vand.u32 2147483647, %v688
        %vm745 = vcmp.lt.f32.partialorder %v744, 0.0004427343
        %v746 = vsel %vm745, %v743, %v740
        %v747 = vadd.f32 %v690, 1.0
        %v748 = vlog2.pop %v747
        %v749 = vmul.f32 %v748, 0.6931472
        %v750 = vmul.f32 -0.5, %v690
        %v751 = vadd.f32 %v750, 1.0
        %v752 = vmul.f32 %v751, %v690
        %v753 = vand.u32 2147483647, %v690
        %vm754 = vcmp.lt.f32.partialorder %v753, 0.0004427343
        %v755 = vsel %vm754, %v752, %v749
        %v756 = vadd.f32 %v692, 1.0
        %v757 = vlog2.pop %v756
        %v758 = vmul.f32 %v757, 0.6931472
        %v759 = vmul.f32 -0.5, %v692
        %v760 = vadd.f32 %v759, 1.0
        %v761 = vmul.f32 %v760, %v692
        %v762 = vand.u32 2147483647, %v692
        %vm763 = vcmp.lt.f32.partialorder %v762, 0.0004427343
        %v764 = vsel %vm763, %v761, %v758
        %v765 = vadd.f32 %v653, %v701
        %v766 = vadd.f32 %v654, %v710
        %v767 = vadd.f32 %v655, %v719
        %v768 = vadd.f32 %v656, %v728
        %v769 = vadd.f32 %v657, %v737
        %v770 = vadd.f32 %v658, %v746
        %v771 = vadd.f32 %v659, %v755
        %v772 = vadd.f32 %v660, %v764
        %v773 = vld [vmem:[%s5] sm:$0xff]
        %v774 = vld [vmem:[%s5 + $0x8] sm:$0xff]
        %v775 = vld [vmem:[%s5 + $0x10] sm:$0xff]
        %v776 = vld [vmem:[%s5 + $0x18] sm:$0xff]
        %778 = vset.pattern.permute.xlu0 0
        %779 = vperm.xlu0 %778, %v773
        %v780 = vpop.permute.xlu0 %779
        %783 = vset.pattern.permute.xlu0 0
        %784 = vperm.xlu0 %783, %v774
        %v785 = vpop.permute.xlu0 %784
        %788 = vset.pattern.permute.xlu0 0
        %789 = vperm.xlu0 %788, %v775
        %v790 = vpop.permute.xlu0 %789
        %793 = vset.pattern.permute.xlu0 0
        %794 = vperm.xlu0 %793, %v776
        %v795 = vpop.permute.xlu0 %794
        %v797 = vmul.f32 %v780, %v765
        %v798 = vmul.f32 %v780, %v766
        %v799 = vmul.f32 %v785, %v767
        %v800 = vmul.f32 %v785, %v768
        %v801 = vmul.f32 %v790, %v769
        %v802 = vmul.f32 %v790, %v770
        %v803 = vmul.f32 %v795, %v771
        %v804 = vmul.f32 %v795, %v772
        %v805 = vadd.f32 %v797, %v799
        %v806 = vadd.f32 %v805, %v801
        %v807 = vadd.f32 %v806, %v803
        %v808 = vrot.slane %v807, 4
        %v809 = vadd.f32 %v807, %v808
        %v810 = vrot.slane %v809, 2
        %v811 = vadd.f32 %v809, %v810
        %v812 = vrot.slane %v811, 1
        %v813 = vadd.f32 %v811, %v812
        %v814 = vadd.f32 %v798, %v800
        %v815 = vadd.f32 %v814, %v802
        %v816 = vadd.f32 %v815, %v804
        %v817 = vrot.slane %v816, 4
        %v818 = vadd.f32 %v816, %v817
        %v819 = vrot.slane %v818, 2
        %v820 = vadd.f32 %v818, %v819
        %v821 = vrot.slane %v820, 1
        %v822 = vadd.f32 %v820, %v821
        %v823 = vld [vmem:[#allocation2] sm:$0x1]
        %825 = vset.pattern.permute.xlu0 0
        %826 = vperm.xlu0 %825, %v823
        %v827 = vpop.permute.xlu0 %826
        %v829 = vlaneseq
        %v830 = vshrl.u32 %v829, 7
        %v831 = vsub.s32 0, %v830
        %v832 = vrot.slane %v827, %v831
        %v833 = vadd.f32 %v813, %v832
        %v834 = vadd.f32 %v822, %v832
        %v837 = vcombine.low %v833, %v834
        %v839 = vunpack.c.l.s4 1966171168
        %v840 = vunpack.c.0.s8 %v839
        %v841 = vlaneseq
        %v842 = vshrl.u32 %v841, 7
        %v843 = vsub.s32 %v840, %v842
        %v844 = vrot.slane %v837, %v843
        %v846 = vunpack.c.l.s4 1966171168
        %v847 = vunpack.c.0.s8 %v846
        %v848 = vlaneseq
        %v849 = vshrl.u32 %v848, 7
        %v850 = vsub.s32 %v847, %v849
        %v851 = vrot.slane %v844, %v850
        %v853 = vlaneseq
        %vm854 = vcmp.ge.s32.totalorder %v853, 0
        %vm855 = vcmp.lt.s32.totalorder %v853, 256
        %vm856 = vmand %vm854, %vm855
        %857 = vst.msk [vmem:[%s274] sm:$0x3] %vm856, %v851
        %s858 = sand.u32 %s183, 1
        %s859 = scalar_lea.sflag [#allocation4], %s858
        %s860 = sand.u32 %s183, 1
        %s861 = smul.addr %s860, 2
        %s862 = scalar_lea.vmem [#allocation3], %s861
        // Predicated region
        $region49: #{tpu_custom_call.1} parent=47 // pred_check
          %p863 = pneg %p193
        $region50: #{tpu_custom_call.1} parent=47 // pred_check_branch
          %865 = sbr.rel (%p863) target = $region52
        $region51: #{tpu_custom_call.1} parent=47 // pred_region
          %s866 = smul.u32 2, %s23
          %s868 = ssub.s32 32, 32
          %869 = vsyncadd %s859, %s868
          %s870 = smul.addr %s866, 16
          %s871 = scalar_lea.hbm %s7, %s870
          %s873 = sshll.u32 %s862, 4
          %s874 = int_to_ptr.vmem [resolvable:$true] %s873
          %876 = dma.vmem_to_hbm [thread:$0]  %s874, 32, %s871, %s859
        $region52: #{tpu_custom_call.1} parent=47 // pred_fallthru
          _
      $region48: #{tpu_custom_call.1} parent=5 // pred_fallthru
        _
      %p877 = scmp.le.s32.totalorder 2, %s18
      // Predicated region
      $region53: #{tpu_custom_call.1} parent=5 // pred_check
        %p878 = pneg %p877
      $region54: #{tpu_custom_call.1} parent=5 // pred_check_branch
        %880 = sbr.rel (%p878) target = $region56
      $region55: #{tpu_custom_call.1} parent=5 // pred_region
        %s881 = ssub.s32 %s18, 2
        // Predicated region
        $region57: #{tpu_custom_call.1} parent=55 // pred_check
          %p882 = pneg %p199
        $region58: #{tpu_custom_call.1} parent=55 // pred_check_branch
          %884 = sbr.rel (%p882) target = $region60
        $region59: #{tpu_custom_call.1} parent=55 // pred_region
          %s885 = sand.u32 %s184, 1
          %s886 = scalar_lea.sflag [#allocation4], %s885
          %s887 = sand.u32 %s184, 1
          %s888 = smul.addr %s887, 2
          %s889 = scalar_lea.vmem [#allocation3], %s888
          %890 = dma.done %s886, 32
        $region60: #{tpu_custom_call.1} parent=55 // pred_fallthru
          _
      $region56: #{tpu_custom_call.1} parent=5 // pred_fallthru
        _
    $region6: #{tpu_custom_call.1} parent=1 // loop_footer
      %s22 = sadd.s32 1, %s18
    $region7: #{tpu_custom_call.1} parent=1 // loop_footer_branch
      %17 = sbr.rel target = $region3
    $region8: #{tpu_custom_call.1} parent=1 // loop_exit
      _
    %891 = vsyncpa [#allocation4], 1
    %s892 = scalar_lea.sflag [#allocation4], 1
    %893 = vsyncpa %s892, 1

</llo_original>
